<compile_context>
chip_gen: v7x
topology: tpu7x:2x2x1
jax: 0.10.0
libtpu: 0.0.40
codegen_flags: <defaults>
</compile_context>

<pallas_src>
import functools

import jax
import jax.numpy as jnp
from jax.experimental import pallas as pl
from jax.experimental.pallas import tpu as pltpu


def channel_attention_kernel(x_ref, w1_ref, w2_ref, o_ref, acc_ref,
                             *, hw_total, hw_tile, n_tile):
    # x_ref: (n_tile, C, hw_tile)   native dtype
    # w1_ref: (C, Cr), w2_ref: (Cr, C)
    # o_ref: (n_tile, C)
    # acc_ref: (2*n_tile, C) f32 scratch — rows [:n_tile]=sum, [n_tile:]=max
    hw_idx = pl.program_id(1)
    n_hw = pl.num_programs(1)
    C = acc_ref.shape[1]

    @pl.when(hw_idx == 0)
    def _init():
        acc_ref[pl.ds(0, n_tile), :] = jnp.zeros((n_tile, C), jnp.float32)
        acc_ref[pl.ds(n_tile, n_tile), :] = jnp.full((n_tile, C), -jnp.inf,
                                                     jnp.float32)

    x = x_ref[...]                         # native dtype (n_tile, C, hw_tile)
    xf = x.astype(jnp.float32)             # f32 for the sum path

    def accumulate(part_sum, part_max):
        acc_ref[pl.ds(0, n_tile), :] += part_sum
        acc_ref[pl.ds(n_tile, n_tile), :] = jnp.maximum(
            acc_ref[pl.ds(n_tile, n_tile), :], part_max)

    ragged = (hw_total % hw_tile) != 0
    if ragged:
        # Full tiles: plain sum/max, no masking cost.
        @pl.when(hw_idx < n_hw - 1)
        def _full_tile():
            accumulate(jnp.sum(xf, axis=-1),
                       jnp.max(x, axis=-1).astype(jnp.float32))

        # Last (partial) tile only: mask out-of-range lanes.
        @pl.when(hw_idx == n_hw - 1)
        def _last_tile():
            lane = jax.lax.broadcasted_iota(jnp.int32, (1, 1, hw_tile), 2)
            valid = (hw_idx * hw_tile + lane) < hw_total
            s = jnp.sum(jnp.where(valid, xf, 0.0), axis=-1)
            m = jnp.max(jnp.where(valid, x, -jnp.inf),
                        axis=-1).astype(jnp.float32)
            accumulate(s, m)
    else:
        accumulate(jnp.sum(xf, axis=-1),
                   jnp.max(x, axis=-1).astype(jnp.float32))

    @pl.when(hw_idx == n_hw - 1)
    def _finalize():
        # Turn the sum rows into means in place, then drive the MXU once with
        # the stacked (2*n_tile, C) pooled slab.
        acc_ref[pl.ds(0, n_tile), :] = (
            acc_ref[pl.ds(0, n_tile), :] * (1.0 / float(hw_total)))
        pooled = acc_ref[...]                                  # (2*n_tile, C)

        w1 = w1_ref[...].astype(jnp.float32)                   # (C, Cr)
        w2 = w2_ref[...].astype(jnp.float32)                   # (Cr, C)

        h = jnp.maximum(
            jnp.dot(pooled, w1, preferred_element_type=jnp.float32), 0.0)
        y = jnp.dot(h, w2, preferred_element_type=jnp.float32)  # (2*n_tile, C)

        out = y[:n_tile] + y[n_tile:]                           # avg + max path
        o_ref[...] = jax.nn.sigmoid(out).astype(o_ref.dtype)


def _vmem_capacity_bytes():
    """Physical VMEM of this generation; conservative 64 MiB fallback (v7x)."""
    try:
        cap = getattr(pltpu.get_tpu_info(), "vmem_capacity_bytes", None)
        if cap:
            return int(cap)
    except Exception:
        pass
    return 64 * 1024 * 1024


def _choose_hw_tile(n_tile, C, HW, itemsize, budget_bytes):
    """Largest lane tile whose double-buffered input block fits the budget.

    Full-extent check comes before the cap so moderately sized HW (even when
    not a 128 multiple) becomes a single unmasked tile.
    """
    bytes_per_lane = max(1, n_tile * C * itemsize)
    max_lanes = (budget_bytes // (2 * bytes_per_lane)) // 128 * 128
    if max_lanes < 128:
        max_lanes = 128          # floor; vmem_limit is sized to the real block
    if HW <= max_lanes:
        return HW                # single full-extent block: no streaming/mask
    return min(16384, max_lanes)


def channel_attention(x, fc1_w, fc2_w, *, hw_tile=None, vmem_limit_bytes=None):
    """x: (N, C, H, W) NCHW (like PyTorch).
    fc1_w: (C//r, C, 1, 1), fc2_w: (C, C//r, 1, 1) — PyTorch conv weights (bias=False).
    Returns (N, C, 1, 1) attention map = sigmoid(mlp(avgpool) + mlp(maxpool))."""
    N, C, H, W = x.shape
    Cr = fc1_w.shape[0]
    HW = H * W
    itemsize = x.dtype.itemsize

    x_r = x.reshape(N, C, HW)
    w1t = jnp.transpose(fc1_w.reshape(Cr, C))   # (C, Cr)
    w2t = jnp.transpose(fc2_w.reshape(C, Cr))   # (Cr, C)

    # Batch tiling: small N -> one full-extent block; otherwise pad N to a
    # multiple of 8 so n_tile stays 8 and blocks stay bounded.
    if N <= 8:
        n_tile, N_pad = N, N
    else:
        n_tile = 8
        N_pad = pl.cdiv(N, 8) * 8
        if N_pad != N:
            x_r = jnp.pad(x_r, ((0, N_pad - N), (0, 0), (0, 0)))

    vmem_cap = _vmem_capacity_bytes()
    if hw_tile is None:
        # ~20% of VMEM per input block -> ~40% once double-buffered.
        hw_tile = _choose_hw_tile(n_tile, C, HW, itemsize,
                                  budget_bytes=vmem_cap // 5)

    n_grid = N_pad // n_tile
    hw_grid = pl.cdiv(HW, hw_tile)

    # Size the compiler's scoped-VMEM limit to the actual footprint.
    if vmem_limit_bytes is None:
        block_bytes = n_tile * C * hw_tile * itemsize
        w_bytes = (C * Cr + Cr * C) * w1t.dtype.itemsize
        scratch_bytes = 2 * n_tile * C * 4
        out_bytes = n_tile * C * itemsize
        need = (2 * block_bytes + 2 * w_bytes + scratch_bytes
                + 2 * out_bytes + (4 << 20))
        vmem_limit_bytes = int(min(max(need, 32 << 20), int(vmem_cap * 0.9)))

    kernel = functools.partial(channel_attention_kernel,
                               hw_total=HW, hw_tile=hw_tile, n_tile=n_tile)

    cost = pl.CostEstimate(
        flops=int(2 * N_pad * C * HW + 8 * N_pad * C * Cr),
        transcendentals=int(N_pad * C),
        bytes_accessed=int(N_pad * C * HW * itemsize
                           + 2 * C * Cr * w1t.dtype.itemsize
                           + N_pad * C * itemsize),
    )

    out = pl.pallas_call(
        kernel,
        out_shape=jax.ShapeDtypeStruct((N_pad, C), x.dtype),
        grid_spec=pltpu.PrefetchScalarGridSpec(
            num_scalar_prefetch=0,
            grid=(n_grid, hw_grid),
            in_specs=[
                pl.BlockSpec((n_tile, C, hw_tile), lambda n, h: (n, 0, h)),
                pl.BlockSpec((C, Cr), lambda n, h: (0, 0)),   # resident weights
                pl.BlockSpec((Cr, C), lambda n, h: (0, 0)),   # resident weights
            ],
            out_specs=pl.BlockSpec((n_tile, C), lambda n, h: (n, 0)),
            scratch_shapes=[
                pltpu.VMEM((2 * n_tile, C), jnp.float32),     # [sum; max]
            ],
        ),
        compiler_params=pltpu.CompilerParams(
            dimension_semantics=("parallel", "arbitrary"),
            vmem_limit_bytes=vmem_limit_bytes,
        ),
        cost_estimate=cost,
    )(x_r, w1t, w2t)

    if N_pad != N:
        out = out[:N]
    return out.reshape(N, C, 1, 1)


def reference(x, fc1_w, fc2_w):
    # Pure-JAX reference matching the PyTorch forward.
    Cr = fc1_w.shape[0]
    C = fc2_w.shape[0]
    w1 = fc1_w.reshape(Cr, C)
    w2 = fc2_w.reshape(C, Cr)
    avg = jnp.mean(x, axis=(2, 3))  # (N, C)
    mx = jnp.max(x, axis=(2, 3))    # (N, C)

    def mlp(p):
        return jnp.maximum(p @ w1.T, 0.0) @ w2.T

    out = mlp(avg) + mlp(mx)
    return jax.nn.sigmoid(out).reshape(x.shape[0], C, 1, 1)


if __name__ == "__main__":
    ratio = 8
    N, C, H, W = 2, 32, 16, 16
    Cr = C // ratio

    key = jax.random.PRNGKey(0)
    k_x, k_w1, k_w2, k_x2, k_x3 = jax.random.split(key, 5)

    x = jax.random.normal(k_x, (N, C, H, W), dtype=jnp.float32)
    fc1_w = 0.1 * jax.random.normal(k_w1, (Cr, C, 1, 1), dtype=jnp.float32)
    fc2_w = 0.1 * jax.random.normal(k_w2, (C, Cr, 1, 1), dtype=jnp.float32)

    # Case 1: default tiling (HW fits one full-extent lane-dense tile).
    out = jax.block_until_ready(channel_attention(x, fc1_w, fc2_w))
    ref = reference(x, fc1_w, fc2_w)
    assert out.shape == (N, C, 1, 1)
    assert jnp.allclose(out, ref, atol=1e-5, rtol=1e-5), "mismatch (case 1)"

    # Case 2: force the multi-tile streamed reduction with a ragged (masked)
    # final HW tile to exercise the accumulator + last-tile-only mask path.
    H2, W2 = 12, 15  # HW = 180 -> one full 128-lane tile + one partial tile
    x2 = jax.random.normal(k_x2, (N, C, H2, W2), dtype=jnp.float32)
    out2 = jax.block_until_ready(
        channel_attention(x2, fc1_w, fc2_w, hw_tile=128))
    ref2 = reference(x2, fc1_w, fc2_w)
    assert jnp.allclose(out2, ref2, atol=1e-5, rtol=1e-5), "mismatch (case 2)"

    # Case 3: ragged batch (N=10 -> padded to 16, two parallel batch tiles).
    x3 = jax.random.normal(k_x3, (10, C, 8, 8), dtype=jnp.float32)
    out3 = jax.block_until_ready(channel_attention(x3, fc1_w, fc2_w))
    ref3 = reference(x3, fc1_w, fc2_w)
    assert out3.shape == (10, C, 1, 1)
    assert jnp.allclose(out3, ref3, atol=1e-5, rtol=1e-5), "mismatch (case 3)"

    print("KERNEL_OK")
</pallas_src>

<mosaic_0001>
module attributes {stable_mosaic.version = 11 : i64} {
  func.func @channel_attention_kernel(%arg0: i32, %arg1: i32, %arg2: memref<2x32x256xf32, #tpu.memory_space<vmem>>, %arg3: memref<32x4xf32, #tpu.memory_space<vmem>>, %arg4: memref<4x32xf32, #tpu.memory_space<vmem>>, %arg5: memref<2x32xf32, #tpu.memory_space<vmem>>, %arg6: memref<4x32xf32, #tpu.memory_space<vmem>>) attributes {dimension_semantics = [#tpu.dimension_semantics<parallel>, #tpu.dimension_semantics<arbitrary>], iteration_bounds = array<i64: 1, 1>, scalar_prefetch = 0 : i64, scratch_operands = 1 : i64, tpu.core_type = #tpu.core_type<tc>, window_params = [{transform_indices = @transform_0, window_bounds = array<i64: 2, 32, 256>}, {pipeline_mode = #tpu.pipeline_mode<synchronous>, transform_indices = @transform_1, window_bounds = array<i64: 32, 4>}, {pipeline_mode = #tpu.pipeline_mode<synchronous>, transform_indices = @transform_2, window_bounds = array<i64: 4, 32>}, {transform_indices = @transform_3, window_bounds = array<i64: 2, 32>}]} {
    %c0_i32 = arith.constant 0 : i32
    %0 = arith.cmpi eq, %arg1, %c0_i32 : i32
    %1 = arith.extui %0 : i1 to i32
    %c0_i32_0 = arith.constant 0 : i32
    %2 = arith.cmpi ne, %1, %c0_i32_0 : i32
    scf.if %2 {
      %cst_13 = arith.constant 0.000000e+00 : f32
      %15 = vector.broadcast %cst_13 : f32 to vector<2x32xf32>
      %c0_14 = arith.constant 0 : index
      %c0_15 = arith.constant 0 : index
      %16 = vector.load %arg6[%c0_14, %c0_15] : memref<4x32xf32, #tpu.memory_space<vmem>>, vector<2x32xf32>
      tpu.vector_store %arg6[%c0_14, %c0_15], %15 {strides = array<i32>} : memref<4x32xf32, #tpu.memory_space<vmem>>, vector<2x32xf32>,
      %cst_16 = arith.constant 0xFF800000 : f32
      %17 = vector.broadcast %cst_16 : f32 to vector<2x32xf32>
      %c2_17 = arith.constant 2 : index
      %c0_18 = arith.constant 0 : index
      %18 = vector.load %arg6[%c2_17, %c0_18] : memref<4x32xf32, #tpu.memory_space<vmem>>, vector<2x32xf32>
      tpu.vector_store %arg6[%c2_17, %c0_18], %17 {strides = array<i32>} : memref<4x32xf32, #tpu.memory_space<vmem>>, vector<2x32xf32>,
    } else {
    }
    %c0 = arith.constant 0 : index
    %c0_1 = arith.constant 0 : index
    %c0_2 = arith.constant 0 : index
    %3 = vector.load %arg2[%c0, %c0_1, %c0_2] : memref<2x32x256xf32, #tpu.memory_space<vmem>>, vector<2x32x256xf32>
    %cst = arith.constant dense<0.000000e+00> : vector<2x32xf32>
    %4 = vector.multi_reduction <add>, %3, %cst [2] : vector<2x32x256xf32> to vector<2x32xf32>
    %cst_3 = arith.constant dense<0xFF800000> : vector<2x32xf32>
    %5 = vector.multi_reduction <maximumf>, %3, %cst_3 [2] : vector<2x32x256xf32> to vector<2x32xf32>
    %c0_4 = arith.constant 0 : index
    %c0_5 = arith.constant 0 : index
    %6 = vector.load %arg6[%c0_4, %c0_5] : memref<4x32xf32, #tpu.memory_space<vmem>>, vector<2x32xf32>
    %7 = arith.addf %6, %4 : vector<2x32xf32>
    %c0_6 = arith.constant 0 : index
    %c0_7 = arith.constant 0 : index
    %8 = vector.load %arg6[%c0_6, %c0_7] : memref<4x32xf32, #tpu.memory_space<vmem>>, vector<2x32xf32>
    tpu.vector_store %arg6[%c0_6, %c0_7], %7 {strides = array<i32>} : memref<4x32xf32, #tpu.memory_space<vmem>>, vector<2x32xf32>,
    %c2 = arith.constant 2 : index
    %c0_8 = arith.constant 0 : index
    %9 = vector.load %arg6[%c2, %c0_8] : memref<4x32xf32, #tpu.memory_space<vmem>>, vector<2x32xf32>
    %10 = arith.maximumf %9, %5 : vector<2x32xf32>
    %c2_9 = arith.constant 2 : index
    %c0_10 = arith.constant 0 : index
    %11 = vector.load %arg6[%c2_9, %c0_10] : memref<4x32xf32, #tpu.memory_space<vmem>>, vector<2x32xf32>
    tpu.vector_store %arg6[%c2_9, %c0_10], %10 {strides = array<i32>} : memref<4x32xf32, #tpu.memory_space<vmem>>, vector<2x32xf32>,
    %c0_i32_11 = arith.constant 0 : i32
    %12 = arith.cmpi eq, %arg1, %c0_i32_11 : i32
    %13 = arith.extui %12 : i1 to i32
    %c0_i32_12 = arith.constant 0 : i32
    %14 = arith.cmpi ne, %13, %c0_i32_12 : i32
    scf.if %14 {
      %c0_13 = arith.constant 0 : index
      %c0_14 = arith.constant 0 : index
      %15 = vector.load %arg6[%c0_13, %c0_14] : memref<4x32xf32, #tpu.memory_space<vmem>>, vector<2x32xf32>
      %cst_15 = arith.constant 3.906250e-03 : f32
      %16 = vector.broadcast %cst_15 : f32 to vector<2x32xf32>
      %17 = arith.mulf %15, %16 : vector<2x32xf32>
      %c0_16 = arith.constant 0 : index
      %c0_17 = arith.constant 0 : index
      %18 = vector.load %arg6[%c0_16, %c0_17] : memref<4x32xf32, #tpu.memory_space<vmem>>, vector<2x32xf32>
      tpu.vector_store %arg6[%c0_16, %c0_17], %17 {strides = array<i32>} : memref<4x32xf32, #tpu.memory_space<vmem>>, vector<2x32xf32>,
      %c0_18 = arith.constant 0 : index
      %c0_19 = arith.constant 0 : index
      %19 = vector.load %arg6[%c0_18, %c0_19] : memref<4x32xf32, #tpu.memory_space<vmem>>, vector<4x32xf32>
      %c0_20 = arith.constant 0 : index
      %c0_21 = arith.constant 0 : index
      %20 = vector.load %arg3[%c0_20, %c0_21] : memref<32x4xf32, #tpu.memory_space<vmem>>, vector<32x4xf32>
      %c0_22 = arith.constant 0 : index
      %c0_23 = arith.constant 0 : index
      %21 = vector.load %arg4[%c0_22, %c0_23] : memref<4x32xf32, #tpu.memory_space<vmem>>, vector<4x32xf32>
      %cst_24 = arith.constant dense<0.000000e+00> : vector<4x4xf32>
      %22 = tpu.matmul %19, %20, %cst_24 {dimension_numbers = #tpu.dot_dimension_numbers<[1], [0], [0], [1], [0, 0, 1, 1], [], []>} : vector<4x32xf32>, vector<32x4xf32>, vector<4x4xf32> -> vector<4x4xf32>
      %cst_25 = arith.constant 0.000000e+00 : f32
      %23 = vector.broadcast %cst_25 : f32 to vector<4x4xf32>
      %24 = arith.maximumf %22, %23 : vector<4x4xf32>
      %cst_26 = arith.constant dense<0.000000e+00> : vector<4x32xf32>
      %25 = tpu.matmul %24, %21, %cst_26 {dimension_numbers = #tpu.dot_dimension_numbers<[1], [0], [0], [1], [0, 0, 1, 1], [], []>} : vector<4x4xf32>, vector<4x32xf32>, vector<4x32xf32> -> vector<4x32xf32>
      %26 = vector.extract_strided_slice %25 {offsets = [0, 0], sizes = [2, 32], strides = [1, 1]} : vector<4x32xf32> to vector<2x32xf32>
      %27 = vector.extract_strided_slice %25 {offsets = [2, 0], sizes = [2, 32], strides = [1, 1]} : vector<4x32xf32> to vector<2x32xf32>
      %28 = arith.addf %26, %27 : vector<2x32xf32>
      %29 = arith.negf %28 : vector<2x32xf32>
      %30 = math.exp %29 : vector<2x32xf32>
      %cst_27 = arith.constant 1.000000e+00 : f32
      %31 = vector.broadcast %cst_27 : f32 to vector<2x32xf32>
      %32 = arith.addf %31, %30 : vector<2x32xf32>
      %33 = arith.divf %31, %32 : vector<2x32xf32>
      %c0_28 = arith.constant 0 : index
      %c0_29 = arith.constant 0 : index
      %34 = vector.load %arg5[%c0_28, %c0_29] : memref<2x32xf32, #tpu.memory_space<vmem>>, vector<2x32xf32>
      tpu.vector_store %arg5[%c0_28, %c0_29], %33 {strides = array<i32>} : memref<2x32xf32, #tpu.memory_space<vmem>>, vector<2x32xf32>,
    } else {
    }
    return
  }
  func.func @transform_0(%arg0: i32, %arg1: i32) -> (i32, i32, i32) {
    %c0_i32 = arith.constant 0 : i32
    %c0_i32_0 = arith.constant 0 : i32
    return %arg0, %c0_i32, %arg1 : i32, i32, i32
  }
  func.func @transform_1(%arg0: i32, %arg1: i32) -> (i32, i32) {
    %c0_i32 = arith.constant 0 : i32
    %c0_i32_0 = arith.constant 0 : i32
    %c0_i32_1 = arith.constant 0 : i32
    return %c0_i32, %c0_i32_0 : i32, i32
  }
  func.func @transform_2(%arg0: i32, %arg1: i32) -> (i32, i32) {
    %c0_i32 = arith.constant 0 : i32
    %c0_i32_0 = arith.constant 0 : i32
    %c0_i32_1 = arith.constant 0 : i32
    return %c0_i32, %c0_i32_0 : i32, i32
  }
  func.func @transform_3(%arg0: i32, %arg1: i32) -> (i32, i32) {
    %c0_i32 = arith.constant 0 : i32
    %c0_i32_0 = arith.constant 0 : i32
    return %arg0, %c0_i32 : i32, i32
  }
}

</mosaic_0001>

<llo_original>
// kernel: tpu_custom_call.1
$region0: #{tpu_custom_call.1}
  #allocation0 [shape = 'u32[]', space=smem, size = 0x4, offset = 0x4, fixed_abs, tag = 'smem constant byte address 0x4 - core index']
  #allocation1 [shape = 'u32[144,128]{1,0:T(1,128)}', space=vmem, size = 0x12000, scoped, tag = 'internal scratch']
  #allocation2 [shape = 'f32[4,32]{1,0:T(4,128)}', space=vmem, size = 0x800, scoped, tag = 'scratch operand']
  %s0 = inlined_call_operand.hbm [shape: f32[2,32,256], index: 0, kind: input, shape index: {}]
  %s1 = inlined_call_operand.vmem [shape: f32[32,4], index: 1, kind: input, shape index: {}]
  %s2 = inlined_call_operand.vmem [shape: f32[4,32], index: 2, kind: input, shape index: {}]
  %s3 = inlined_call_operand.hbm [shape: f32[2,32], index: 3, kind: output, shape index: {}]
  %s4 = sld [smem:[#allocation0]]
  $region34: #{tpu_custom_call.1} parent=0
    _
  %s6 = ssub.s32 1, %s4
  %s7 = scalar_select 0, %s6, %s4
  $region1: #{tpu_custom_call.1} parent=0
    #allocation3 [shape = 'u8[65536]{0}', space=vmem, size = 0x10000, scoped, tag = 'input window, operand 0, single buffered']
    #allocation4 [shape = 's32[1]{0}', space=sflag, size = 0x4, scoped, tag = 'scoped memory for tpu_custom_call.1']
    #allocation5 [shape = 's32[1]{0}', space=sflag, size = 0x4, scoped, tag = 'scoped memory for tpu_custom_call.1']
    #allocation6 [shape = 'u8[1024]{0}', space=vmem, size = 0x400, scoped, tag = 'output window, operand 0, single buffered']
    %8 = vsyncpa [#allocation4], 0
    %9 = vsyncpa [#allocation5], 0
    // Predicated region
    $region2: #{tpu_custom_call.1} parent=1 // pred_check
      _
    $region3: #{tpu_custom_call.1} parent=1 // pred_check_branch
      %11 = sbr.rel (0) target = $region5
    $region4: #{tpu_custom_call.1} parent=1 // pred_region
      %s13 = ssub.s32 2048, 2048
      %14 = vsyncadd [#allocation4], %s13
      %s15 = sshll.u32 [#allocation3], 4
      %s16 = int_to_ptr.vmem [resolvable:$true] %s15
      %21 = dma.hbm_to_vmem [thread:$0]  %s0, 2048, %s16, [#allocation4], 256, 256, 16
    $region5: #{tpu_custom_call.1} parent=1 // pred_fallthru
      _
    // Predicated region
    $region6: #{tpu_custom_call.1} parent=1 // pred_check
      _
    $region7: #{tpu_custom_call.1} parent=1 // pred_check_branch
      %23 = sbr.rel (0) target = $region9
    $region8: #{tpu_custom_call.1} parent=1 // pred_region
      _
    $region9: #{tpu_custom_call.1} parent=1 // pred_fallthru
      _
    // Predicated region
    $region10: #{tpu_custom_call.1} parent=1 // pred_check
      _
    $region11: #{tpu_custom_call.1} parent=1 // pred_check_branch
      %25 = sbr.rel (0) target = $region13
    $region12: #{tpu_custom_call.1} parent=1 // pred_region
      _
    $region13: #{tpu_custom_call.1} parent=1 // pred_fallthru
      _
    // Predicated region
    $region14: #{tpu_custom_call.1} parent=1 // pred_check
      _
    $region15: #{tpu_custom_call.1} parent=1 // pred_check_branch
      %27 = sbr.rel (0) target = $region17
    $region16: #{tpu_custom_call.1} parent=1 // pred_region
      %28 = dma.done [#allocation4], 2048
    $region17: #{tpu_custom_call.1} parent=1 // pred_fallthru
      _
    %p29 = scmp.eq.s32.totalorder 0, 0
    // Predicated region
    $region18: #{tpu_custom_call.1} parent=1 // pred_check
      %p30 = pneg %p29
    $region19: #{tpu_custom_call.1} parent=1 // pred_check_branch
      %32 = sbr.rel (%p30) target = $region21
    $region20: #{tpu_custom_call.1} parent=1 // pred_region
      %vm33 = vcmask 254976
      %34 = vst.msk [vmem:[#allocation2] sm:$0x3] %vm33, 0.0
      %35 = vst.msk [vmem:[#allocation2 + $0x2] sm:$0x3] %vm33, -inf
    $region21: #{tpu_custom_call.1} parent=1 // pred_fallthru
      _
    %v36 = vld [vmem:[#allocation3] sm:$0xff]
    %v37 = vld [vmem:[#allocation3 + $0x8] sm:$0xff]
    %v38 = vld [vmem:[#allocation3 + $0x10] sm:$0xff]
    %v39 = vld [vmem:[#allocation3 + $0x18] sm:$0xff]
    %v40 = vld [vmem:[#allocation3 + $0x20] sm:$0xff]
    %v41 = vld [vmem:[#allocation3 + $0x28] sm:$0xff]
    %v42 = vld [vmem:[#allocation3 + $0x30] sm:$0xff]
    %v43 = vld [vmem:[#allocation3 + $0x38] sm:$0xff]
    %v44 = vld [vmem:[#allocation3 + $0x40] sm:$0xff]
    %v45 = vld [vmem:[#allocation3 + $0x48] sm:$0xff]
    %v46 = vld [vmem:[#allocation3 + $0x50] sm:$0xff]
    %v47 = vld [vmem:[#allocation3 + $0x58] sm:$0xff]
    %v48 = vld [vmem:[#allocation3 + $0x60] sm:$0xff]
    %v49 = vld [vmem:[#allocation3 + $0x68] sm:$0xff]
    %v50 = vld [vmem:[#allocation3 + $0x70] sm:$0xff]
    %v51 = vld [vmem:[#allocation3 + $0x78] sm:$0xff]
    %v52 = vadd.f32 %v36, %v37
    %53 = vadd.xlane.f32.xlu0 %v52
    %v54 = vpop.xlane.xlu0 %53
    %v55 = vadd.f32 %v38, %v39
    %56 = vadd.xlane.f32.xlu0 %v55
    %v57 = vpop.xlane.xlu0 %56
    %v58 = vadd.f32 %v40, %v41
    %59 = vadd.xlane.f32.xlu0 %v58
    %v60 = vpop.xlane.xlu0 %59
    %v61 = vadd.f32 %v42, %v43
    %62 = vadd.xlane.f32.xlu0 %v61
    %v63 = vpop.xlane.xlu0 %62
    %v64 = vadd.f32 %v44, %v45
    %65 = vadd.xlane.f32.xlu0 %v64
    %v66 = vpop.xlane.xlu0 %65
    %v67 = vadd.f32 %v46, %v47
    %68 = vadd.xlane.f32.xlu0 %v67
    %v69 = vpop.xlane.xlu0 %68
    %v70 = vadd.f32 %v48, %v49
    %71 = vadd.xlane.f32.xlu0 %v70
    %v72 = vpop.xlane.xlu0 %71
    %v73 = vadd.f32 %v50, %v51
    %74 = vadd.xlane.f32.xlu0 %v73
    %v75 = vpop.xlane.xlu0 %74
    %v76 = vmax.f32 %v36, %v37
    %77 = vmax.xlane.f32.xlu0 %v76
    %v78 = vpop.xlane.xlu0 %77
    %v79 = vmax.f32 %v38, %v39
    %80 = vmax.xlane.f32.xlu0 %v79
    %v81 = vpop.xlane.xlu0 %80
    %v82 = vmax.f32 %v40, %v41
    %83 = vmax.xlane.f32.xlu0 %v82
    %v84 = vpop.xlane.xlu0 %83
    %v85 = vmax.f32 %v42, %v43
    %86 = vmax.xlane.f32.xlu0 %v85
    %v87 = vpop.xlane.xlu0 %86
    %v88 = vmax.f32 %v44, %v45
    %89 = vmax.xlane.f32.xlu0 %v88
    %v90 = vpop.xlane.xlu0 %89
    %v91 = vmax.f32 %v46, %v47
    %92 = vmax.xlane.f32.xlu0 %v91
    %v93 = vpop.xlane.xlu0 %92
    %v94 = vmax.f32 %v48, %v49
    %95 = vmax.xlane.f32.xlu0 %v94
    %v96 = vpop.xlane.xlu0 %95
    %v97 = vmax.f32 %v50, %v51
    %98 = vmax.xlane.f32.xlu0 %v97
    %v99 = vpop.xlane.xlu0 %98
    %v100 = vld [vmem:[#allocation2] sm:$0x3]
    %v109 = vlaneseq
    %v110 = vand.u32 %v109, 127
    %v111 = vlaneseq
    %v112 = vshrl.u32 %v111, 7
    %v113 = vsub.s32 %v110, %v112
    %v114 = vrot.slane %v54, %v113
    %v115 = vadd.s32 %v110, 4294967288
    %v116 = vlaneseq
    %v117 = vshrl.u32 %v116, 7
    %v118 = vsub.s32 %v115, %v117
    %v119 = vrot.slane %v57, %v118
    %vm120 = vcmask 130112
    %v121 = vsel %vm120, %v119, %v114
    %v122 = vadd.s32 %v110, 4294967280
    %v123 = vlaneseq
    %v124 = vshrl.u32 %v123, 7
    %v125 = vsub.s32 %v122, %v124
    %v126 = vrot.slane %v60, %v125
    %vm127 = vcmask 195712
    %v128 = vsel %vm127, %v126, %v121
    %v129 = vadd.s32 %v110, 4294967272
    %v130 = vlaneseq
    %v131 = vshrl.u32 %v130, 7
    %v132 = vsub.s32 %v129, %v131
    %v133 = vrot.slane %v63, %v132
    %vm134 = vcmask 261312
    %v135 = vsel %vm134, %v133, %v128
    %v136 = vlaneseq
    %v137 = vshrl.u32 %v136, 7
    %v138 = vsub.s32 %v110, %v137
    %v139 = vrot.slane %v66, %v138
    %v140 = vlaneseq
    %v141 = vshrl.u32 %v140, 7
    %v142 = vsub.s32 %v115, %v141
    %v143 = vrot.slane %v69, %v142
    %v144 = vsel %vm120, %v143, %v139
    %v145 = vlaneseq
    %v146 = vshrl.u32 %v145, 7
    %v147 = vsub.s32 %v122, %v146
    %v148 = vrot.slane %v72, %v147
    %v149 = vsel %vm127, %v148, %v144
    %v150 = vlaneseq
    %v151 = vshrl.u32 %v150, 7
    %v152 = vsub.s32 %v129, %v151
    %v153 = vrot.slane %v75, %v152
    %v154 = vsel %vm134, %v153, %v149
    %vm155 = vcmask 1041409
    %v156 = vsel %vm155, %v154, %v135
    %v158 = vadd.f32 %v100, %v156
    %vm159 = vcmask 254976
    %160 = vst.msk [vmem:[#allocation2] sm:$0x3] %vm159, %v158
    %v161 = vld [vmem:[#allocation2 + $0x2] sm:$0x3]
    %v170 = vlaneseq
    %v171 = vshrl.u32 %v170, 7
    %v172 = vsub.s32 %v110, %v171
    %v173 = vrot.slane %v78, %v172
    %v174 = vlaneseq
    %v175 = vshrl.u32 %v174, 7
    %v176 = vsub.s32 %v115, %v175
    %v177 = vrot.slane %v81, %v176
    %v178 = vsel %vm120, %v177, %v173
    %v179 = vlaneseq
    %v180 = vshrl.u32 %v179, 7
    %v181 = vsub.s32 %v122, %v180
    %v182 = vrot.slane %v84, %v181
    %v183 = vsel %vm127, %v182, %v178
    %v184 = vlaneseq
    %v185 = vshrl.u32 %v184, 7
    %v186 = vsub.s32 %v129, %v185
    %v187 = vrot.slane %v87, %v186
    %v188 = vsel %vm134, %v187, %v183
    %v189 = vlaneseq
    %v190 = vshrl.u32 %v189, 7
    %v191 = vsub.s32 %v110, %v190
    %v192 = vrot.slane %v90, %v191
    %v193 = vlaneseq
    %v194 = vshrl.u32 %v193, 7
    %v195 = vsub.s32 %v115, %v194
    %v196 = vrot.slane %v93, %v195
    %v197 = vsel %vm120, %v196, %v192
    %v198 = vlaneseq
    %v199 = vshrl.u32 %v198, 7
    %v200 = vsub.s32 %v122, %v199
    %v201 = vrot.slane %v96, %v200
    %v202 = vsel %vm127, %v201, %v197
    %v203 = vlaneseq
    %v204 = vshrl.u32 %v203, 7
    %v205 = vsub.s32 %v129, %v204
    %v206 = vrot.slane %v99, %v205
    %v207 = vsel %vm134, %v206, %v202
    %v208 = vsel %vm155, %v207, %v188
    %v210 = vmax.f32 %v161, %v208
    %211 = vst.msk [vmem:[#allocation2 + $0x2] sm:$0x3] %vm159, %v210
    // Predicated region
    $region22: #{tpu_custom_call.1} parent=1 // pred_check
      %p212 = pneg %p29
    $region23: #{tpu_custom_call.1} parent=1 // pred_check_branch
      %214 = sbr.rel (%p212) target = $region25
    $region24: #{tpu_custom_call.1} parent=1 // pred_region
      %v215 = vld [vmem:[#allocation2] sm:$0x3]
      %v216 = vmul.f32 %v215, 0.00390625
      %217 = vst.msk [vmem:[#allocation2] sm:$0x3] %vm159, %v216
      %v218 = vld [vmem:[#allocation2] sm:$0xf]
      %v219 = vld [vmem:[%s1] sm:$0xff]
      %v220 = vld [vmem:[%s1 + $0x8] sm:$0xff]
      %v221 = vld [vmem:[%s1 + $0x10] sm:$0xff]
      %v222 = vld [vmem:[%s1 + $0x18] sm:$0xff]
      %v223 = vld [vmem:[%s2] sm:$0xf]
      %vm224 = vcmask 261120
      %v226 = vsel %vm224, %v218, 0
      %228 = vmatprep.subr.mxu0 0.0
      %229 = vmatpush1.msra.mxu0 %v219
      %230 = vmatprep.subr.mxu0 0.0
      %231 = vmatpush1.msra.mxu0 %v220
      %232 = vmatprep.subr.mxu0 0.0
      %233 = vmatpush1.msra.mxu0 %v221
      %234 = vmatprep.subr.mxu0 0.0
      %235 = vmatpush1.msra.mxu0 %v222
      %236 = vmatprep.subr.mxu0 0.0
      %237 = vmatpush1.msra.mxu0 0.0
      %238 = vmatprep.subr.mxu0 0.0
      %239 = vmatpush1.msra.mxu0 0.0
      %240 = vmatprep.subr.mxu0 0.0
      %241 = vmatpush1.msra.mxu0 0.0
      %242 = vmatprep.subr.mxu0 0.0
      %243 = vmatpush1.msra.mxu0 0.0
      %244 = vmatprep.subr.mxu0 0.0
      %245 = vmatpush1.msra.mxu0 0.0
      %246 = vmatprep.subr.mxu0 0.0
      %247 = vmatpush1.msra.mxu0 0.0
      %248 = vmatprep.subr.mxu0 0.0
      %249 = vmatpush1.msra.mxu0 0.0
      %250 = vmatprep.subr.mxu0 0.0
      %251 = vmatpush1.msra.mxu0 0.0
      %252 = vmatprep.subr.mxu0 0.0
      %253 = vmatpush1.msra.mxu0 0.0
      %254 = vmatprep.subr.mxu0 0.0
      %255 = vmatpush1.msra.mxu0 0.0
      %256 = vmatprep.subr.mxu0 0.0
      %257 = vmatpush1.msra.mxu0 0.0
      %258 = vmatprep.subr.mxu0 0.0
      %259 = vmatpush1.msra.mxu0 0.0
      %260 = vmatprep.subr.mxu0 0.0
      %261 = vmatpush1.msra.mxu0 0.0
      %262 = vmatprep.subr.mxu0 0.0
      %263 = vmatpush1.msra.mxu0 0.0
      %264 = vmatprep.subr.mxu0 0.0
      %265 = vmatpush1.msra.mxu0 0.0
      %266 = vmatprep.subr.mxu0 0.0
      %267 = vmatpush1.msra.mxu0 0.0
      %268 = vmatprep.subr.mxu0 0.0
      %269 = vmatpush1.msra.mxu0 0.0
      %270 = vmatprep.subr.mxu0 0.0
      %271 = vmatpush1.msra.mxu0 0.0
      %272 = vmatprep.subr.mxu0 0.0
      %273 = vmatpush1.msra.mxu0 0.0
      %274 = vmatprep.subr.mxu0 0.0
      %275 = vmatpush1.msra.mxu0 0.0
      %276 = vmatprep.subr.mxu0 0.0
      %277 = vmatpush1.msra.mxu0 0.0
      %278 = vmatprep.subr.mxu0 0.0
      %279 = vmatpush1.msra.mxu0 0.0
      %280 = vmatprep.subr.mxu0 0.0
      %281 = vmatpush1.msra.mxu0 0.0
      %282 = vmatprep.subr.mxu0 0.0
      %283 = vmatpush1.msra.mxu0 0.0
      %284 = vmatprep.subr.mxu0 0.0
      %285 = vmatpush1.msra.mxu0 0.0
      %286 = vmatprep.subr.mxu0 0.0
      %287 = vmatpush1.msra.mxu0 0.0
      %288 = vmatprep.subr.mxu0 0.0
      %289 = vmatpush1.msra.mxu0 0.0
      %290 = vmatprep.subr.mxu0 0.0
      %291 = vmatpush1.msra.mxu0 0.0
      %292 = vmatprep.mubr.f32.mxu0 0.0
      %293 = vmatmul.mubr.f32.gmra.mrb[0].mxu0 %v226
      %v294 = vpop.f32.mrb[0].mxu0
      %v295 = vadd.f32 0.0, %v294
      %v296 = vpop.f32.mrb[0].mxu0
      %297 = vdwg.mxu0
      %v298 = vmax.f32 %v295, 0.0
      %vm299 = vcmask 31744
      %v301 = vsel %vm299, %v298, 0
      %vm303 = vcmask 1043456
      %v305 = vsel %vm303, %v223, 0
      %307 = vmatprep.subr.mxu0 0.0
      %308 = vmatpush1.msra.mxu0 %v305
      %309 = vmatprep.subr.mxu0 0.0
      %310 = vmatpush1.msra.mxu0 0.0
      %311 = vmatprep.subr.mxu0 0.0
      %312 = vmatpush1.msra.mxu0 0.0
      %313 = vmatprep.subr.mxu0 0.0
      %314 = vmatpush1.msra.mxu0 0.0
      %315 = vmatprep.subr.mxu0 0.0
      %316 = vmatpush1.msra.mxu0 0.0
      %317 = vmatprep.subr.mxu0 0.0
      %318 = vmatpush1.msra.mxu0 0.0
      %319 = vmatprep.subr.mxu0 0.0
      %320 = vmatpush1.msra.mxu0 0.0
      %321 = vmatprep.subr.mxu0 0.0
      %322 = vmatpush1.msra.mxu0 0.0
      %323 = vmatprep.subr.mxu0 0.0
      %324 = vmatpush1.msra.mxu0 0.0
      %325 = vmatprep.subr.mxu0 0.0
      %326 = vmatpush1.msra.mxu0 0.0
      %327 = vmatprep.subr.mxu0 0.0
      %328 = vmatpush1.msra.mxu0 0.0
      %329 = vmatprep.subr.mxu0 0.0
      %330 = vmatpush1.msra.mxu0 0.0
      %331 = vmatprep.subr.mxu0 0.0
      %332 = vmatpush1.msra.mxu0 0.0
      %333 = vmatprep.subr.mxu0 0.0
      %334 = vmatpush1.msra.mxu0 0.0
      %335 = vmatprep.subr.mxu0 0.0
      %336 = vmatpush1.msra.mxu0 0.0
      %337 = vmatprep.subr.mxu0 0.0
      %338 = vmatpush1.msra.mxu0 0.0
      %339 = vmatprep.subr.mxu0 0.0
      %340 = vmatpush1.msra.mxu0 0.0
      %341 = vmatprep.subr.mxu0 0.0
      %342 = vmatpush1.msra.mxu0 0.0
      %343 = vmatprep.subr.mxu0 0.0
      %344 = vmatpush1.msra.mxu0 0.0
      %345 = vmatprep.subr.mxu0 0.0
      %346 = vmatpush1.msra.mxu0 0.0
      %347 = vmatprep.subr.mxu0 0.0
      %348 = vmatpush1.msra.mxu0 0.0
      %349 = vmatprep.subr.mxu0 0.0
      %350 = vmatpush1.msra.mxu0 0.0
      %351 = vmatprep.subr.mxu0 0.0
      %352 = vmatpush1.msra.mxu0 0.0
      %353 = vmatprep.subr.mxu0 0.0
      %354 = vmatpush1.msra.mxu0 0.0
      %355 = vmatprep.subr.mxu0 0.0
      %356 = vmatpush1.msra.mxu0 0.0
      %357 = vmatprep.subr.mxu0 0.0
      %358 = vmatpush1.msra.mxu0 0.0
      %359 = vmatprep.subr.mxu0 0.0
      %360 = vmatpush1.msra.mxu0 0.0
      %361 = vmatprep.subr.mxu0 0.0
      %362 = vmatpush1.msra.mxu0 0.0
      %363 = vmatprep.subr.mxu0 0.0
      %364 = vmatpush1.msra.mxu0 0.0
      %365 = vmatprep.subr.mxu0 0.0
      %366 = vmatpush1.msra.mxu0 0.0
      %367 = vmatprep.subr.mxu0 0.0
      %368 = vmatpush1.msra.mxu0 0.0
      %369 = vmatprep.subr.mxu0 0.0
      %370 = vmatpush1.msra.mxu0 0.0
      %371 = vmatprep.mubr.f32.mxu0 0.0
      %372 = vmatmul.mubr.f32.gmra.mrb[0].mxu0 %v301
      %v373 = vpop.f32.mrb[0].mxu0
      %v374 = vadd.f32 0.0, %v373
      %v375 = vpop.f32.mrb[0].mxu0
      %376 = vdwg.mxu0
      %v378 = vrot.slane %v374, 2
      %v380 = vadd.f32 %v374, %v378
      %v381 = vxor.u32 %v380, 2147483648
      %v382 = vmul.f32 %v381, 1.442695
      %v383 = vpow.pop %v382
      %v384 = vadd.f32 %v383, 1.0
      %v385 = vrcp.pop %v384
      %v386 = vmul.f32 1.0, %v385
      %387 = vst.msk [vmem:[#allocation6] sm:$0x3] %vm159, %v386
    $region25: #{tpu_custom_call.1} parent=1 // pred_fallthru
      _
    // Predicated region
    $region26: #{tpu_custom_call.1} parent=1 // pred_check
      _
    $region27: #{tpu_custom_call.1} parent=1 // pred_check_branch
      %389 = sbr.rel (0) target = $region29
    $region28: #{tpu_custom_call.1} parent=1 // pred_region
      %s391 = ssub.s32 32, 32
      %392 = vsyncadd [#allocation5], %s391
      %s394 = sshll.u32 [#allocation6], 4
      %s395 = int_to_ptr.vmem [resolvable:$true] %s394
      %397 = dma.vmem_to_hbm [thread:$0]  %s395, 32, %s3, [#allocation5]
    $region29: #{tpu_custom_call.1} parent=1 // pred_fallthru
      _
    // Predicated region
    $region30: #{tpu_custom_call.1} parent=1 // pred_check
      _
    $region31: #{tpu_custom_call.1} parent=1 // pred_check_branch
      %399 = sbr.rel (0) target = $region33
    $region32: #{tpu_custom_call.1} parent=1 // pred_region
      %400 = dma.done [#allocation5], 32
    $region33: #{tpu_custom_call.1} parent=1 // pred_fallthru
      _
    %401 = vsyncpa [#allocation4], 1
    %402 = vsyncpa [#allocation5], 1

</llo_original>
